<compile_context>
chip_gen: v7x
topology: tpu7x:2x2x1
jax: 0.10.0
libtpu: 0.0.40
codegen_flags: <defaults>
</compile_context>

<pallas_src>
import jax
import jax.numpy as jnp
from jax.experimental import pallas as pl
from jax.experimental.pallas import tpu as pltpu


def cbow_kernel(x_ref, w1_ref, b1_ref, w2_ref, b2_ref, out_ref):
    # x_ref  : (E+F, TB) f32   per-sample [sum_emb ; img] columns, batch on lanes
    # w1_ref : (O, E+F)  f32   linear1 weight (torch layout, concat folded in)
    # b1_ref : (O, 1)    f32   linear1 bias as a column (broadcast over lanes)
    # w2_ref : (1, O)    f32   linear2 weight row
    # b2_ref : (1,)      f32   linear2 bias, SMEM scalar
    # out_ref: (1, TB)   f32   lane-dense sigmoid outputs
    h = (jnp.dot(w1_ref[...], x_ref[...], preferred_element_type=jnp.float32)
         + b1_ref[...])                                   # (O, TB) single MXU pass
    h = jnp.maximum(h, 0.0)                               # ReLU on VPU
    logit = (jnp.dot(w2_ref[...], h, preferred_element_type=jnp.float32)
             + b2_ref[0])                                 # (1, TB)
    out_ref[...] = jax.nn.sigmoid(logit)                  # EUP


def preprocess_params(emb, w1, b1, w2, b2):
    """One-time per-parameter-set preprocessing (hoisted out of the forward path)."""
    V, E = emb.shape
    O = w1.shape[0]
    return {
        # sum(emb[idx], axis=-1) == rowsum[idx]; depends only on the table.
        "emb_rowsum": jnp.sum(emb, axis=1).astype(jnp.float32),   # (V,)
        "w1": w1.astype(jnp.float32),                             # (O, E+F)
        "b1_col": b1.reshape(O, 1).astype(jnp.float32),           # (O, 1)
        "w2_row": w2.reshape(1, O).astype(jnp.float32),           # (1, O)
        "b2": b2.reshape(1).astype(jnp.float32),                  # (1,)
    }


def cbow_forward_batched(input_text, input_img_feat, params, *, lane_block=128):
    """Batched forward. input_text: (B, T) int, input_img_feat: (B, F) f32 -> (B,) f32.

    lane_block=128 fills the vreg lane width on every TPU generation; use 256
    on v6e/v7x to also fill the 256-wide MXU.
    """
    B, T = input_text.shape
    F_img = input_img_feat.shape[1]
    O, EF = params["w1"].shape
    E = EF - F_img
    # The literal torch forward (cat along dim 0 feeding linear1) requires T == E.
    assert T == E, "torch.cat([sum(emb), img]) feeding linear1 requires T == embedding_dim"

    # Wrapper-side O(B*T) gather of the precomputed per-row embedding sums
    # (review option (a)); batch lands on the lane axis.  NOTE: JAX clamps
    # out-of-range indices here instead of erroring like nn.Embedding would.
    s_T = params["emb_rowsum"][input_text.T.astype(jnp.int32)]        # (T, B)
    x_T = jnp.concatenate(
        [s_T.astype(jnp.float32), input_img_feat.T.astype(jnp.float32)],
        axis=0)                                                       # (E+F, B)

    Bp = pl.cdiv(B, lane_block) * lane_block
    if Bp != B:
        x_T = jnp.pad(x_T, ((0, 0), (0, Bp - B)))                     # pad lanes

    out = pl.pallas_call(
        cbow_kernel,
        out_shape=jax.ShapeDtypeStruct((1, Bp), jnp.float32),
        grid_spec=pltpu.PrefetchScalarGridSpec(
            num_scalar_prefetch=0,
            grid=(Bp // lane_block,),
            in_specs=[
                pl.BlockSpec((EF, lane_block), lambda b: (0, b)),     # activations, per-block
                pl.BlockSpec((O, EF), lambda b: (0, 0)),              # weights stay resident
                pl.BlockSpec((O, 1), lambda b: (0, 0)),
                pl.BlockSpec((1, O), lambda b: (0, 0)),
                pl.BlockSpec(memory_space=pltpu.MemorySpace.SMEM),    # b2 scalar
            ],
            out_specs=pl.BlockSpec((1, lane_block), lambda b: (0, b)),
        ),
        compiler_params=pltpu.CompilerParams(
            dimension_semantics=("parallel",)),   # v7x: shard batch over 2 TCs
    )(x_T, params["w1"], params["b1_col"], params["w2_row"], params["b2"])
    return out[0, :B]                                                 # (B,)


def cbow_forward(input_text, input_img_feat, params):
    """Literal (unbatched) PyTorch forward: (T,) int, (F,) f32 -> (1,) f32."""
    return cbow_forward_batched(input_text[None, :], input_img_feat[None, :], params)


def cbow_reference(input_text, input_img_feat, emb, w1, b1, w2, b2):
    """Pure-JAX reproduction of the literal PyTorch forward."""
    x = emb[input_text]                       # (T, E)
    x = jnp.sum(x, axis=1)                    # (T,)
    x = jnp.concatenate([x, input_img_feat])  # (E + F,)
    x = jnp.maximum(w1 @ x + b1, 0.0)         # (O,)
    x = w2 @ x + b2                           # (1,)
    return jax.nn.sigmoid(x)


if __name__ == "__main__":
    # Small deterministic config; seq_len must equal embedding_dim (see note above).
    vocab_size, embedding_dim, img_feat_size, output_dim = 64, 32, 16, 64
    seq_len = embedding_dim   # 32
    B = 256                   # batched demo: 2 grid steps of 128 lanes

    key = jax.random.PRNGKey(0)
    k_emb, k_w1, k_b1, k_w2, k_b2, k_txt, k_img = jax.random.split(key, 7)

    # nn.Embedding default init: N(0,1); nn.Linear default: U(-1/sqrt(fan_in), ...)
    emb = jax.random.normal(k_emb, (vocab_size, embedding_dim), jnp.float32)
    lim1 = 1.0 / jnp.sqrt(embedding_dim + img_feat_size)
    w1 = jax.random.uniform(k_w1, (output_dim, embedding_dim + img_feat_size),
                            jnp.float32, -lim1, lim1)
    b1 = jax.random.uniform(k_b1, (output_dim,), jnp.float32, -lim1, lim1)
    lim2 = 1.0 / jnp.sqrt(output_dim)
    w2 = jax.random.uniform(k_w2, (1, output_dim), jnp.float32, -lim2, lim2)
    b2 = jax.random.uniform(k_b2, (1,), jnp.float32, -lim2, lim2)

    # Hoisted one-time preprocessing (NOT part of the per-call forward path).
    params = preprocess_params(emb, w1, b1, w2, b2)

    # TODO(synk): the PyTorch forward's `print(input_img_feat.size())` is a
    # host-side debug print and is intentionally not reproduced in the kernel.

    # --- unbatched case: literal PyTorch signature -------------------------
    txt1 = jax.random.randint(k_txt, (seq_len,), 0, vocab_size, jnp.int32)
    img1 = jax.random.normal(k_img, (img_feat_size,), jnp.float32)
    out1 = jax.block_until_ready(cbow_forward(txt1, img1, params))
    ref1 = cbow_reference(txt1, img1, emb, w1, b1, w2, b2)
    assert out1.shape == (1,)
    assert jnp.allclose(out1, ref1, atol=2e-5, rtol=2e-5), (out1, ref1)

    # --- batched case: B samples through one pallas_call -------------------
    txt_b = jax.random.randint(k_txt, (B, seq_len), 0, vocab_size, jnp.int32)
    img_b = jax.random.normal(k_img, (B, img_feat_size), jnp.float32)
    fwd = jax.jit(lambda t, i: cbow_forward_batched(t, i, params))
    out_b = jax.block_until_ready(fwd(txt_b, img_b))
    ref_b = jax.vmap(lambda t, i: cbow_reference(t, i, emb, w1, b1, w2, b2))(txt_b, img_b)[:, 0]
    assert out_b.shape == (B,)
    assert jnp.allclose(out_b, ref_b, atol=2e-5, rtol=2e-5), (
        jnp.max(jnp.abs(out_b - ref_b)))

    print("KERNEL_OK")
</pallas_src>

<mosaic_0001>
module attributes {stable_mosaic.version = 11 : i64} {
  func.func @cbow_kernel(%arg0: i32, %arg1: memref<48x128xf32, #tpu.memory_space<vmem>>, %arg2: memref<64x48xf32, #tpu.memory_space<vmem>>, %arg3: memref<64x1xf32, #tpu.memory_space<vmem>>, %arg4: memref<1x64xf32, #tpu.memory_space<vmem>>, %arg5: memref<1xf32, #tpu.memory_space<smem>>, %arg6: memref<1x128xf32, #tpu.memory_space<vmem>>) attributes {dimension_semantics = [#tpu.dimension_semantics<parallel>], iteration_bounds = array<i64: 1>, scalar_prefetch = 0 : i64, scratch_operands = 0 : i64, tpu.core_type = #tpu.core_type<tc>, window_params = [{transform_indices = @transform_0, window_bounds = array<i64: 48, 128>}, {pipeline_mode = #tpu.pipeline_mode<synchronous>, transform_indices = @transform_1, window_bounds = array<i64: 64, 48>}, {pipeline_mode = #tpu.pipeline_mode<synchronous>, transform_indices = @transform_2, window_bounds = array<i64: 64, 1>}, {pipeline_mode = #tpu.pipeline_mode<synchronous>, transform_indices = @transform_3, window_bounds = array<i64: 1, 64>}, {transform_indices = @transform_4, window_bounds = array<i64: 1>}, {transform_indices = @transform_5, window_bounds = array<i64: 1, 128>}]} {
    %c0 = arith.constant 0 : index
    %c0_0 = arith.constant 0 : index
    %0 = vector.load %arg2[%c0, %c0_0] : memref<64x48xf32, #tpu.memory_space<vmem>>, vector<64x48xf32>
    %c0_1 = arith.constant 0 : index
    %c0_2 = arith.constant 0 : index
    %1 = vector.load %arg1[%c0_1, %c0_2] : memref<48x128xf32, #tpu.memory_space<vmem>>, vector<48x128xf32>
    %cst = arith.constant dense<0.000000e+00> : vector<64x128xf32>
    %2 = tpu.matmul %0, %1, %cst {dimension_numbers = #tpu.dot_dimension_numbers<[1], [0], [0], [1], [0, 0, 1, 1], [], []>} : vector<64x48xf32>, vector<48x128xf32>, vector<64x128xf32> -> vector<64x128xf32>
    %c0_3 = arith.constant 0 : index
    %c0_4 = arith.constant 0 : index
    %3 = vector.load %arg3[%c0_3, %c0_4] : memref<64x1xf32, #tpu.memory_space<vmem>>, vector<64x1xf32>
    %4 = vector.broadcast %3 : vector<64x1xf32> to vector<64x128xf32>
    %5 = arith.addf %2, %4 : vector<64x128xf32>
    %cst_5 = arith.constant 0.000000e+00 : f32
    %6 = vector.broadcast %cst_5 : f32 to vector<64x128xf32>
    %7 = arith.maximumf %5, %6 : vector<64x128xf32>
    %c0_6 = arith.constant 0 : index
    %c0_7 = arith.constant 0 : index
    %8 = vector.load %arg4[%c0_6, %c0_7] : memref<1x64xf32, #tpu.memory_space<vmem>>, vector<1x64xf32>
    %cst_8 = arith.constant dense<0.000000e+00> : vector<1x128xf32>
    %9 = tpu.matmul %8, %7, %cst_8 {dimension_numbers = #tpu.dot_dimension_numbers<[1], [0], [0], [1], [0, 0, 1, 1], [], []>} : vector<1x64xf32>, vector<64x128xf32>, vector<1x128xf32> -> vector<1x128xf32>
    %c0_9 = arith.constant 0 : index
    %10 = memref.load %arg5[%c0_9] : memref<1xf32, #tpu.memory_space<smem>>
    %11 = vector.broadcast %10 : f32 to vector<1x128xf32>
    %12 = arith.addf %9, %11 : vector<1x128xf32>
    %13 = arith.negf %12 : vector<1x128xf32>
    %14 = math.exp %13 : vector<1x128xf32>
    %cst_10 = arith.constant 1.000000e+00 : f32
    %15 = vector.broadcast %cst_10 : f32 to vector<1x128xf32>
    %16 = arith.addf %15, %14 : vector<1x128xf32>
    %17 = arith.divf %15, %16 : vector<1x128xf32>
    %c0_11 = arith.constant 0 : index
    %c0_12 = arith.constant 0 : index
    %18 = vector.load %arg6[%c0_11, %c0_12] : memref<1x128xf32, #tpu.memory_space<vmem>>, vector<1x128xf32>
    tpu.vector_store %arg6[%c0_11, %c0_12], %17 {strides = array<i32>} : memref<1x128xf32, #tpu.memory_space<vmem>>, vector<1x128xf32>,
    return
  }
  func.func @transform_0(%arg0: i32) -> (i32, i32) {
    %c0_i32 = arith.constant 0 : i32
    %c0_i32_0 = arith.constant 0 : i32
    return %c0_i32, %arg0 : i32, i32
  }
  func.func @transform_1(%arg0: i32) -> (i32, i32) {
    %c0_i32 = arith.constant 0 : i32
    %c0_i32_0 = arith.constant 0 : i32
    %c0_i32_1 = arith.constant 0 : i32
    return %c0_i32, %c0_i32_0 : i32, i32
  }
  func.func @transform_2(%arg0: i32) -> (i32, i32) {
    %c0_i32 = arith.constant 0 : i32
    %c0_i32_0 = arith.constant 0 : i32
    %c0_i32_1 = arith.constant 0 : i32
    return %c0_i32, %c0_i32_0 : i32, i32
  }
  func.func @transform_3(%arg0: i32) -> (i32, i32) {
    %c0_i32 = arith.constant 0 : i32
    %c0_i32_0 = arith.constant 0 : i32
    %c0_i32_1 = arith.constant 0 : i32
    return %c0_i32, %c0_i32_0 : i32, i32
  }
  func.func @transform_4(%arg0: i32) -> i32 {
    %c0_i32 = arith.constant 0 : i32
    %c0_i32_0 = arith.constant 0 : i32
    return %c0_i32 : i32
  }
  func.func @transform_5(%arg0: i32) -> (i32, i32) {
    %c0_i32 = arith.constant 0 : i32
    %c0_i32_0 = arith.constant 0 : i32
    return %c0_i32, %arg0 : i32, i32
  }
}

</mosaic_0001>

<llo_original>
// kernel: tpu_custom_call.1
$region0: #{tpu_custom_call.1}
  #allocation0 [shape = 'u32[]', space=smem, size = 0x4, offset = 0x4, fixed_abs, tag = 'smem constant byte address 0x4 - core index']
  #allocation1 [shape = 'u32[144,128]{1,0:T(1,128)}', space=vmem, size = 0x12000, scoped, tag = 'internal scratch']
  #allocation2 [shape = 'f32[1]{0:T(128)S(6)}', space=smem, size = 0x200, scoped, tag = 'scoped memory for tpu_custom_call.1']
  %s0 = inlined_call_operand.vmem [shape: f32[48,128], index: 0, kind: input, shape index: {}]
  %s1 = inlined_call_operand.vmem [shape: f32[64,48], index: 1, kind: input, shape index: {}]
  %s2 = inlined_call_operand.vmem [shape: f32[64,1], index: 2, kind: input, shape index: {}]
  %s3 = inlined_call_operand.vmem [shape: f32[1,64], index: 3, kind: input, shape index: {}]
  %s4 = inlined_call_operand.<no memory space> [shape: f32[1], index: 4, kind: input, shape index: {}]
  %s5 = inlined_call_operand.hbm [shape: f32[1,128], index: 5, kind: output, shape index: {}]
  %s6 = sld [smem:[#allocation0]]
  $region30: #{tpu_custom_call.1} parent=0
    _
  %s8 = ssub.s32 1, %s6
  %s9 = scalar_select 0, %s8, %s6
  %10 = sst [smem:[#allocation2]] %s4
  $region1: #{tpu_custom_call.1} parent=0
    #allocation3 [shape = 'u8[512]{0}', space=vmem, size = 0x400, scoped, tag = 'output window, operand 0, single buffered']
    #allocation4 [shape = 's32[1]{0}', space=sflag, size = 0x4, scoped, tag = 'scoped memory for tpu_custom_call.1']
    %11 = vsyncpa [#allocation4], 0
    // Predicated region
    $region2: #{tpu_custom_call.1} parent=1 // pred_check
      _
    $region3: #{tpu_custom_call.1} parent=1 // pred_check_branch
      %13 = sbr.rel (0) target = $region5
    $region4: #{tpu_custom_call.1} parent=1 // pred_region
      _
    $region5: #{tpu_custom_call.1} parent=1 // pred_fallthru
      _
    // Predicated region
    $region6: #{tpu_custom_call.1} parent=1 // pred_check
      _
    $region7: #{tpu_custom_call.1} parent=1 // pred_check_branch
      %15 = sbr.rel (0) target = $region9
    $region8: #{tpu_custom_call.1} parent=1 // pred_region
      _
    $region9: #{tpu_custom_call.1} parent=1 // pred_fallthru
      _
    // Predicated region
    $region10: #{tpu_custom_call.1} parent=1 // pred_check
      _
    $region11: #{tpu_custom_call.1} parent=1 // pred_check_branch
      %17 = sbr.rel (0) target = $region13
    $region12: #{tpu_custom_call.1} parent=1 // pred_region
      _
    $region13: #{tpu_custom_call.1} parent=1 // pred_fallthru
      _
    // Predicated region
    $region14: #{tpu_custom_call.1} parent=1 // pred_check
      _
    $region15: #{tpu_custom_call.1} parent=1 // pred_check_branch
      %19 = sbr.rel (0) target = $region17
    $region16: #{tpu_custom_call.1} parent=1 // pred_region
      _
    $region17: #{tpu_custom_call.1} parent=1 // pred_fallthru
      _
    // Predicated region
    $region18: #{tpu_custom_call.1} parent=1 // pred_check
      _
    $region19: #{tpu_custom_call.1} parent=1 // pred_check_branch
      %21 = sbr.rel (0) target = $region21
    $region20: #{tpu_custom_call.1} parent=1 // pred_region
      _
    $region21: #{tpu_custom_call.1} parent=1 // pred_fallthru
      _
    %v22 = vld [vmem:[%s1] sm:$0xff]
    %v23 = vld [vmem:[%s1 + $0x8] sm:$0xff]
    %v24 = vld [vmem:[%s1 + $0x10] sm:$0xff]
    %v25 = vld [vmem:[%s1 + $0x18] sm:$0xff]
    %v26 = vld [vmem:[%s1 + $0x20] sm:$0xff]
    %v27 = vld [vmem:[%s1 + $0x28] sm:$0xff]
    %v28 = vld [vmem:[%s1 + $0x30] sm:$0xff]
    %v29 = vld [vmem:[%s1 + $0x38] sm:$0xff]
    %v30 = vld [vmem:[%s0] sm:$0xff]
    %v31 = vld [vmem:[%s0 + $0x8] sm:$0xff]
    %v32 = vld [vmem:[%s0 + $0x10] sm:$0xff]
    %v33 = vld [vmem:[%s0 + $0x18] sm:$0xff]
    %v34 = vld [vmem:[%s0 + $0x20] sm:$0xff]
    %v35 = vld [vmem:[%s0 + $0x28] sm:$0xff]
    %v36 = vld [vmem:[%s2] sm:$0xff]
    %v37 = vld [vmem:[%s2 + $0x8] sm:$0xff]
    %v38 = vld [vmem:[%s2 + $0x10] sm:$0xff]
    %v39 = vld [vmem:[%s2 + $0x18] sm:$0xff]
    %v40 = vld [vmem:[%s2 + $0x20] sm:$0xff]
    %v41 = vld [vmem:[%s2 + $0x28] sm:$0xff]
    %v42 = vld [vmem:[%s2 + $0x30] sm:$0xff]
    %v43 = vld [vmem:[%s2 + $0x38] sm:$0xff]
    %45 = vset.pattern.permute.xlu0 0
    %46 = vperm.xlu0 %45, %v36
    %v47 = vpop.permute.xlu0 %46
    %50 = vset.pattern.permute.xlu0 0
    %51 = vperm.xlu0 %50, %v37
    %v52 = vpop.permute.xlu0 %51
    %55 = vset.pattern.permute.xlu0 0
    %56 = vperm.xlu0 %55, %v38
    %v57 = vpop.permute.xlu0 %56
    %60 = vset.pattern.permute.xlu0 0
    %61 = vperm.xlu0 %60, %v39
    %v62 = vpop.permute.xlu0 %61
    %65 = vset.pattern.permute.xlu0 0
    %66 = vperm.xlu0 %65, %v40
    %v67 = vpop.permute.xlu0 %66
    %70 = vset.pattern.permute.xlu0 0
    %71 = vperm.xlu0 %70, %v41
    %v72 = vpop.permute.xlu0 %71
    %75 = vset.pattern.permute.xlu0 0
    %76 = vperm.xlu0 %75, %v42
    %v77 = vpop.permute.xlu0 %76
    %80 = vset.pattern.permute.xlu0 0
    %81 = vperm.xlu0 %80, %v43
    %v82 = vpop.permute.xlu0 %81
    %vm84 = vcmask 392192
    %v86 = vsel %vm84, %v22, 0
    %v89 = vsel %vm84, %v23, 0
    %v92 = vsel %vm84, %v24, 0
    %v95 = vsel %vm84, %v25, 0
    %v98 = vsel %vm84, %v26, 0
    %v101 = vsel %vm84, %v27, 0
    %v104 = vsel %vm84, %v28, 0
    %v107 = vsel %vm84, %v29, 0
    %109 = vmatprep.subr.mxu0 0.0
    %110 = vmatpush1.msra.mxu0 %v30
    %111 = vmatprep.subr.mxu0 0.0
    %112 = vmatpush1.msra.mxu0 %v31
    %113 = vmatprep.subr.mxu0 0.0
    %114 = vmatpush1.msra.mxu0 %v32
    %115 = vmatprep.subr.mxu0 0.0
    %116 = vmatpush1.msra.mxu0 %v33
    %117 = vmatprep.subr.mxu0 0.0
    %118 = vmatpush1.msra.mxu0 %v34
    %119 = vmatprep.subr.mxu0 0.0
    %120 = vmatpush1.msra.mxu0 %v35
    %121 = vmatprep.subr.mxu0 0.0
    %122 = vmatpush1.msra.mxu0 0.0
    %123 = vmatprep.subr.mxu0 0.0
    %124 = vmatpush1.msra.mxu0 0.0
    %125 = vmatprep.subr.mxu0 0.0
    %126 = vmatpush1.msra.mxu0 0.0
    %127 = vmatprep.subr.mxu0 0.0
    %128 = vmatpush1.msra.mxu0 0.0
    %129 = vmatprep.subr.mxu0 0.0
    %130 = vmatpush1.msra.mxu0 0.0
    %131 = vmatprep.subr.mxu0 0.0
    %132 = vmatpush1.msra.mxu0 0.0
    %133 = vmatprep.subr.mxu0 0.0
    %134 = vmatpush1.msra.mxu0 0.0
    %135 = vmatprep.subr.mxu0 0.0
    %136 = vmatpush1.msra.mxu0 0.0
    %137 = vmatprep.subr.mxu0 0.0
    %138 = vmatpush1.msra.mxu0 0.0
    %139 = vmatprep.subr.mxu0 0.0
    %140 = vmatpush1.msra.mxu0 0.0
    %141 = vmatprep.subr.mxu0 0.0
    %142 = vmatpush1.msra.mxu0 0.0
    %143 = vmatprep.subr.mxu0 0.0
    %144 = vmatpush1.msra.mxu0 0.0
    %145 = vmatprep.subr.mxu0 0.0
    %146 = vmatpush1.msra.mxu0 0.0
    %147 = vmatprep.subr.mxu0 0.0
    %148 = vmatpush1.msra.mxu0 0.0
    %149 = vmatprep.subr.mxu0 0.0
    %150 = vmatpush1.msra.mxu0 0.0
    %151 = vmatprep.subr.mxu0 0.0
    %152 = vmatpush1.msra.mxu0 0.0
    %153 = vmatprep.subr.mxu0 0.0
    %154 = vmatpush1.msra.mxu0 0.0
    %155 = vmatprep.subr.mxu0 0.0
    %156 = vmatpush1.msra.mxu0 0.0
    %157 = vmatprep.subr.mxu0 0.0
    %158 = vmatpush1.msra.mxu0 0.0
    %159 = vmatprep.subr.mxu0 0.0
    %160 = vmatpush1.msra.mxu0 0.0
    %161 = vmatprep.subr.mxu0 0.0
    %162 = vmatpush1.msra.mxu0 0.0
    %163 = vmatprep.subr.mxu0 0.0
    %164 = vmatpush1.msra.mxu0 0.0
    %165 = vmatprep.subr.mxu0 0.0
    %166 = vmatpush1.msra.mxu0 0.0
    %167 = vmatprep.subr.mxu0 0.0
    %168 = vmatpush1.msra.mxu0 0.0
    %169 = vmatprep.subr.mxu0 0.0
    %170 = vmatpush1.msra.mxu0 0.0
    %171 = vmatprep.subr.mxu0 0.0
    %172 = vmatpush1.msra.mxu0 0.0
    %173 = vmatprep.mubr.f32.mxu0 0.0
    %174 = vmatmul.mubr.f32.gmra.mrb[0].mxu0 %v86
    %v175 = vpop.f32.mrb[0].mxu0
    %v176 = vadd.f32 %v47, %v175
    %v177 = vpop.f32.mrb[0].mxu0
    %178 = vmatprep.mubr.f32.mxu0 0.0
    %179 = vmatmul.mubr.f32.gmra.mrb[0].mxu0 %v89
    %v180 = vpop.f32.mrb[0].mxu0
    %v181 = vadd.f32 %v52, %v180
    %v182 = vpop.f32.mrb[0].mxu0
    %183 = vmatprep.mubr.f32.mxu0 0.0
    %184 = vmatmul.mubr.f32.gmra.mrb[0].mxu0 %v92
    %v185 = vpop.f32.mrb[0].mxu0
    %v186 = vadd.f32 %v57, %v185
    %v187 = vpop.f32.mrb[0].mxu0
    %188 = vmatprep.mubr.f32.mxu0 0.0
    %189 = vmatmul.mubr.f32.gmra.mrb[0].mxu0 %v95
    %v190 = vpop.f32.mrb[0].mxu0
    %v191 = vadd.f32 %v62, %v190
    %v192 = vpop.f32.mrb[0].mxu0
    %193 = vmatprep.mubr.f32.mxu0 0.0
    %194 = vmatmul.mubr.f32.gmra.mrb[0].mxu0 %v98
    %v195 = vpop.f32.mrb[0].mxu0
    %v196 = vadd.f32 %v67, %v195
    %v197 = vpop.f32.mrb[0].mxu0
    %198 = vmatprep.mubr.f32.mxu0 0.0
    %199 = vmatmul.mubr.f32.gmra.mrb[0].mxu0 %v101
    %v200 = vpop.f32.mrb[0].mxu0
    %v201 = vadd.f32 %v72, %v200
    %v202 = vpop.f32.mrb[0].mxu0
    %203 = vmatprep.mubr.f32.mxu0 0.0
    %204 = vmatmul.mubr.f32.gmra.mrb[0].mxu0 %v104
    %v205 = vpop.f32.mrb[0].mxu0
    %v206 = vadd.f32 %v77, %v205
    %v207 = vpop.f32.mrb[0].mxu0
    %208 = vmatprep.mubr.f32.mxu0 0.0
    %209 = vmatmul.mubr.f32.gmra.mrb[0].mxu0 %v107
    %v210 = vpop.f32.mrb[0].mxu0
    %v211 = vadd.f32 %v82, %v210
    %v212 = vpop.f32.mrb[0].mxu0
    %213 = vdwg.mxu0
    %v214 = vmax.f32 %v176, 0.0
    %v215 = vmax.f32 %v181, 0.0
    %v216 = vmax.f32 %v186, 0.0
    %v217 = vmax.f32 %v191, 0.0
    %v218 = vmax.f32 %v196, 0.0
    %v219 = vmax.f32 %v201, 0.0
    %v220 = vmax.f32 %v206, 0.0
    %v221 = vmax.f32 %v211, 0.0
    %v222 = vld [vmem:[%s3] sm:$0x1]
    %s223 = sld [smem:[#allocation2]]
    %v224 = vstv %s223
    %vm225 = vcmask 523264
    %v227 = vsel %vm225, %v222, 0
    %229 = vmatprep.subr.mxu0 0.0
    %230 = vmatpush1.msra.mxu0 %v214
    %231 = vmatprep.subr.mxu0 0.0
    %232 = vmatpush1.msra.mxu0 %v215
    %233 = vmatprep.subr.mxu0 0.0
    %234 = vmatpush1.msra.mxu0 %v216
    %235 = vmatprep.subr.mxu0 0.0
    %236 = vmatpush1.msra.mxu0 %v217
    %237 = vmatprep.subr.mxu0 0.0
    %238 = vmatpush1.msra.mxu0 %v218
    %239 = vmatprep.subr.mxu0 0.0
    %240 = vmatpush1.msra.mxu0 %v219
    %241 = vmatprep.subr.mxu0 0.0
    %242 = vmatpush1.msra.mxu0 %v220
    %243 = vmatprep.subr.mxu0 0.0
    %244 = vmatpush1.msra.mxu0 %v221
    %245 = vmatprep.subr.mxu0 0.0
    %246 = vmatpush1.msra.mxu0 0.0
    %247 = vmatprep.subr.mxu0 0.0
    %248 = vmatpush1.msra.mxu0 0.0
    %249 = vmatprep.subr.mxu0 0.0
    %250 = vmatpush1.msra.mxu0 0.0
    %251 = vmatprep.subr.mxu0 0.0
    %252 = vmatpush1.msra.mxu0 0.0
    %253 = vmatprep.subr.mxu0 0.0
    %254 = vmatpush1.msra.mxu0 0.0
    %255 = vmatprep.subr.mxu0 0.0
    %256 = vmatpush1.msra.mxu0 0.0
    %257 = vmatprep.subr.mxu0 0.0
    %258 = vmatpush1.msra.mxu0 0.0
    %259 = vmatprep.subr.mxu0 0.0
    %260 = vmatpush1.msra.mxu0 0.0
    %261 = vmatprep.subr.mxu0 0.0
    %262 = vmatpush1.msra.mxu0 0.0
    %263 = vmatprep.subr.mxu0 0.0
    %264 = vmatpush1.msra.mxu0 0.0
    %265 = vmatprep.subr.mxu0 0.0
    %266 = vmatpush1.msra.mxu0 0.0
    %267 = vmatprep.subr.mxu0 0.0
    %268 = vmatpush1.msra.mxu0 0.0
    %269 = vmatprep.subr.mxu0 0.0
    %270 = vmatpush1.msra.mxu0 0.0
    %271 = vmatprep.subr.mxu0 0.0
    %272 = vmatpush1.msra.mxu0 0.0
    %273 = vmatprep.subr.mxu0 0.0
    %274 = vmatpush1.msra.mxu0 0.0
    %275 = vmatprep.subr.mxu0 0.0
    %276 = vmatpush1.msra.mxu0 0.0
    %277 = vmatprep.subr.mxu0 0.0
    %278 = vmatpush1.msra.mxu0 0.0
    %279 = vmatprep.subr.mxu0 0.0
    %280 = vmatpush1.msra.mxu0 0.0
    %281 = vmatprep.subr.mxu0 0.0
    %282 = vmatpush1.msra.mxu0 0.0
    %283 = vmatprep.subr.mxu0 0.0
    %284 = vmatpush1.msra.mxu0 0.0
    %285 = vmatprep.subr.mxu0 0.0
    %286 = vmatpush1.msra.mxu0 0.0
    %287 = vmatprep.subr.mxu0 0.0
    %288 = vmatpush1.msra.mxu0 0.0
    %289 = vmatprep.subr.mxu0 0.0
    %290 = vmatpush1.msra.mxu0 0.0
    %291 = vmatprep.subr.mxu0 0.0
    %292 = vmatpush1.msra.mxu0 0.0
    %293 = vmatprep.mubr.f32.mxu0 0.0
    %294 = vmatmul.mubr.f32.gmra.mrb[0].mxu0 %v227
    %v295 = vpop.f32.mrb[0].mxu0
    %v296 = vadd.f32 %v224, %v295
    %v297 = vpop.f32.mrb[0].mxu0
    %298 = vdwg.mxu0
    %v299 = vxor.u32 %v296, 2147483648
    %v300 = vmul.f32 %v299, 1.442695
    %v301 = vpow.pop %v300
    %v302 = vadd.f32 %v301, 1.0
    %v303 = vrcp.pop %v302
    %v304 = vmul.f32 1.0, %v303
    %305 = vst [vmem:[#allocation3] sm:$0x1] %v304
    // Predicated region
    $region22: #{tpu_custom_call.1} parent=1 // pred_check
      _
    $region23: #{tpu_custom_call.1} parent=1 // pred_check_branch
      %307 = sbr.rel (0) target = $region25
    $region24: #{tpu_custom_call.1} parent=1 // pred_region
      %s309 = ssub.s32 16, 16
      %310 = vsyncadd [#allocation4], %s309
      %s312 = sshll.u32 [#allocation3], 4
      %s313 = int_to_ptr.vmem [resolvable:$true] %s312
      %315 = dma.vmem_to_hbm [thread:$0]  %s313, 16, %s5, [#allocation4]
    $region25: #{tpu_custom_call.1} parent=1 // pred_fallthru
      _
    // Predicated region
    $region26: #{tpu_custom_call.1} parent=1 // pred_check
      _
    $region27: #{tpu_custom_call.1} parent=1 // pred_check_branch
      %317 = sbr.rel (0) target = $region29
    $region28: #{tpu_custom_call.1} parent=1 // pred_region
      %318 = dma.done [#allocation4], 16
    $region29: #{tpu_custom_call.1} parent=1 // pred_fallthru
      _
    %319 = vsyncpa [#allocation4], 1

</llo_original>
